<compile_context>
chip_gen: v7x
topology: tpu7x:2x2x1
jax: 0.10.0
libtpu: 0.0.40
codegen_flags: <defaults>
</compile_context>

<pallas_src>
import functools
import math

import jax
import jax.numpy as jnp
from jax import lax
from jax.experimental import pallas as pl
from jax.experimental.pallas import tpu as pltpu

BN_EPS = 1e-5


def _round_up(x, m):
    return (x + m - 1) // m * m


def _cdiv(a, b):
    return -(-a // b)


def _vmem_budget_bytes():
    """Generation-aware usable-VMEM budget (~75% of physical capacity)."""
    cap = 64 * 1024 * 1024  # conservative fallback (v7x physical)
    try:
        cap = int(pltpu.get_tpu_info().vmem_capacity_bytes)
    except Exception:
        pass
    return max(32 * 1024 * 1024, (cap * 3) // 4)


def _choose_block_rows(hidden, weight_bytes, budget):
    """Largest row tile that keeps one matmul pass inside the VMEM budget.

    Accounts for the double-buffered resident weight (2x) and ~14 f32 values
    per row (double-buffered in/out row tiles + kernel-body temporaries).
    """
    fixed = 2 * weight_bytes + (1 << 16)
    per_row = 14 * hidden * 4
    cap = max(8, (budget - fixed) // per_row)
    cap = min(cap, 1024)
    if cap >= 256:
        cap = (cap // 256) * 256          # MXU-friendly on v6e/v7x
    elif cap >= 128:
        cap = (cap // 128) * 128
    else:
        cap = (cap // 8) * 8
    return max(cap, 8)


# ---------------------------------------------------------------------------
# Fused small-N kernel: whole [N, H] block resident in VMEM.
# ---------------------------------------------------------------------------
def _fused_kernel(x_ref, g1_ref, be1_ref, w1_ref, b1_ref,
                  g2_ref, be2_ref, w2_ref, b2_ref, o_ref, *, inv_n, n_valid):
    x = x_ref[...].astype(jnp.float32)
    rows = lax.broadcasted_iota(jnp.int32, (x.shape[0], 1), 0)
    valid = rows < n_valid

    # BN1 batch statistics (padded x rows are zero, so no mask is needed).
    s1 = jnp.sum(x, axis=0, keepdims=True)
    ss1 = jnp.sum(x * x, axis=0, keepdims=True)
    mean1 = s1 * inv_n
    var1 = jnp.maximum(ss1 * inv_n - mean1 * mean1, 0.0)
    scale1 = g1_ref[...] * lax.rsqrt(var1 + BN_EPS)
    shift1 = be1_ref[...] - mean1 * scale1

    hact = jnp.maximum(x * scale1 + shift1, 0.0)
    h1 = lax.dot_general(                       # h @ W1  (W1 in (in, out) layout)
        hact.astype(jnp.bfloat16), w1_ref[...],
        dimension_numbers=(((1,), (0,)), ((), ())),
        preferred_element_type=jnp.float32) + b1_ref[...]

    # BN2 batch statistics (padded rows are nonzero after the bias -> mask).
    h1m = jnp.where(valid, h1, 0.0)
    s2 = jnp.sum(h1m, axis=0, keepdims=True)
    ss2 = jnp.sum(h1m * h1m, axis=0, keepdims=True)
    mean2 = s2 * inv_n
    var2 = jnp.maximum(ss2 * inv_n - mean2 * mean2, 0.0)
    scale2 = g2_ref[...] * lax.rsqrt(var2 + BN_EPS)
    shift2 = be2_ref[...] - mean2 * scale2

    hact2 = jnp.maximum(h1 * scale2 + shift2, 0.0)
    y = lax.dot_general(
        hact2.astype(jnp.bfloat16), w2_ref[...],
        dimension_numbers=(((1,), (0,)), ((), ())),
        preferred_element_type=jnp.float32) + b2_ref[...]

    o_ref[...] = (x + y).astype(o_ref.dtype)


# ---------------------------------------------------------------------------
# Pass 1 (tiled): BN1(folded) -> ReLU -> Linear1, accumulating per-split BN2
# batch statistics (leading grid axis is "parallel" => per-core partials).
# ---------------------------------------------------------------------------
def _pass1_kernel(x_ref, scale1_ref, shift1_ref, w1_ref, b1_ref,
                  h1_ref, s2_ref, ss2_ref, *, n_valid, block_rows,
                  tiles_per_split):
    c = pl.program_id(0)
    i = pl.program_id(1)

    @pl.when(i == 0)
    def _():
        s2_ref[...] = jnp.zeros_like(s2_ref)
        ss2_ref[...] = jnp.zeros_like(ss2_ref)

    x = x_ref[...].astype(jnp.float32)
    hact = jnp.maximum(x * scale1_ref[...] + shift1_ref[...], 0.0)

    h1 = lax.dot_general(                       # h @ W1  (W1 in (in, out) layout)
        hact.astype(jnp.bfloat16), w1_ref[...],
        dimension_numbers=(((1,), (0,)), ((), ())),
        preferred_element_type=jnp.float32) + b1_ref[...]
    h1_ref[...] = h1.astype(h1_ref.dtype)       # bf16 intermediate to HBM

    # BN2 statistics over valid rows only (padded rows masked), f32 accum.
    tile = c * tiles_per_split + i
    rows = tile * block_rows + lax.broadcasted_iota(jnp.int32, (block_rows, 1), 0)
    hm = jnp.where(rows < n_valid, h1, 0.0)
    s2_ref[...] += jnp.sum(hm, axis=0, keepdims=True)
    ss2_ref[...] += jnp.sum(hm * hm, axis=0, keepdims=True)


# ---------------------------------------------------------------------------
# Pass 2 (tiled): BN2(folded) -> ReLU -> Linear2 -> residual.
# ---------------------------------------------------------------------------
def _pass2_kernel(x_ref, h1_ref, scale2_ref, shift2_ref, w2_ref, b2_ref, o_ref):
    h1 = h1_ref[...].astype(jnp.float32)
    hact = jnp.maximum(h1 * scale2_ref[...] + shift2_ref[...], 0.0)
    y = lax.dot_general(
        hact.astype(jnp.bfloat16), w2_ref[...],
        dimension_numbers=(((1,), (0,)), ((), ())),
        preferred_element_type=jnp.float32) + b2_ref[...]
    o_ref[...] = (x_ref[...].astype(jnp.float32) + y).astype(o_ref.dtype)


# ---------------------------------------------------------------------------
# Wrapper
# ---------------------------------------------------------------------------
def prepare_params(params):
    """One-time conversion for the kernel: weights transposed to (in, out)
    layout (canonical MXU orientation, no per-tile relayout) and cast to
    bf16 (halves weight DMA and VMEM)."""
    p = {k: v for k, v in params.items() if k not in ("w1", "w2")}
    p["w1t"] = jnp.asarray(params["w1"]).T.astype(jnp.bfloat16)
    p["w2t"] = jnp.asarray(params["w2"]).T.astype(jnp.bfloat16)
    return p


def fc_res_block(x, params, *, block_rows=None, fused=None):
    """x: any shape with trailing dim == hidden_size. Returns same shape/dtype."""
    hidden = int(params["g1"].shape[0])
    assert x.shape[-1] == hidden
    assert hidden % 128 == 0, "hidden_size must be a multiple of 128 (TPU lanes)"

    orig_shape = x.shape
    h = x.reshape(-1, hidden)                  # [N, H]
    n = h.shape[0]
    inv_n = 1.0 / float(n)

    if "w1t" in params:                        # prepared: bf16, (in, out)
        w1t, w2t = params["w1t"], params["w2t"]
    else:                                      # slow path: convert per call
        w1t = params["w1"].T.astype(jnp.bfloat16)
        w2t = params["w2"].T.astype(jnp.bfloat16)
    weight_bytes = hidden * hidden * w1t.dtype.itemsize

    row = lambda a: a.reshape(1, hidden).astype(jnp.float32)
    g1, be1, b1 = row(params["g1"]), row(params["be1"]), row(params["b1"])
    g2, be2, b2 = row(params["g2"]), row(params["be2"]), row(params["b2"])

    budget = _vmem_budget_bytes()

    # ------------------------------------------------------------------
    # Small-N fused path: single kernel, x / h1 never round-trip to HBM.
    # ------------------------------------------------------------------
    n_pad8 = _round_up(max(n, 1), 8)
    fused_bytes = 12 * n_pad8 * hidden * 4 + 4 * weight_bytes + (1 << 16)
    use_fused = fused if fused is not None else (fused_bytes <= int(0.6 * budget))

    if use_fused:
        hp = jnp.pad(h, ((0, n_pad8 - n), (0, 0))) if n_pad8 != n else h
        rep = lambda shape: pl.BlockSpec(shape, lambda i: (0,) * len(shape))
        kern = functools.partial(_fused_kernel, inv_n=inv_n, n_valid=n)
        out = pl.pallas_call(
            kern,
            grid=(1,),
            in_specs=[rep((n_pad8, hidden)),
                      rep((1, hidden)), rep((1, hidden)),
                      rep((hidden, hidden)), rep((1, hidden)),
                      rep((1, hidden)), rep((1, hidden)),
                      rep((hidden, hidden)), rep((1, hidden))],
            out_specs=rep((n_pad8, hidden)),
            out_shape=jax.ShapeDtypeStruct((n_pad8, hidden), x.dtype),
            compiler_params=pltpu.CompilerParams(
                dimension_semantics=("arbitrary",),
                vmem_limit_bytes=budget),
            cost_estimate=pl.CostEstimate(
                flops=4 * n_pad8 * hidden * hidden,
                transcendentals=2 * hidden,
                bytes_accessed=8 * n_pad8 * hidden + 2 * weight_bytes),
        )(hp, g1, be1, w1t, b1, g2, be2, w2t, b2)
        if n_pad8 != n:
            out = out[:n]
        return out.reshape(orig_shape)

    # ------------------------------------------------------------------
    # Tiled two-kernel path.
    # ------------------------------------------------------------------
    tm = block_rows if block_rows is not None else _choose_block_rows(
        hidden, weight_bytes, budget)
    tm = max(8, min(_round_up(tm, 8), _round_up(n, 8)))
    num_tiles = _cdiv(n, tm)
    # Per-core partial BN2 stats: leading "parallel" axis unlocks both
    # TensorCores on v7x; harmless (sequential) on v5e/v6e.
    num_splits = 2 if num_tiles >= 4 else 1
    tiles_per_split = _cdiv(num_tiles, num_splits)
    num_tiles = tiles_per_split * num_splits
    n_pad = num_tiles * tm
    hp = jnp.pad(h, ((0, n_pad - n), (0, 0))) if n_pad != n else h

    # BN1 batch statistics + fold -> per-column scale/shift.  Plain XLA
    # streaming reduction (already HBM-bound) + a tiny (1, H) fold; avoids a
    # dedicated stats kernel and per-tile rsqrt recomputation.
    hf = h.astype(jnp.float32)
    mean1 = jnp.mean(hf, axis=0, keepdims=True)
    var1 = jnp.maximum(jnp.mean(hf * hf, axis=0, keepdims=True) - mean1 * mean1, 0.0)
    scale1 = g1 * lax.rsqrt(var1 + BN_EPS)
    shift1 = be1 - mean1 * scale1

    tile1 = pl.BlockSpec((tm, hidden), lambda c, i: (c * tiles_per_split + i, 0))
    rep1 = lambda shape: pl.BlockSpec(shape, lambda c, i: (0,) * len(shape))
    stat1 = pl.BlockSpec((1, hidden), lambda c, i: (c, 0))

    k1 = functools.partial(_pass1_kernel, n_valid=n, block_rows=tm,
                           tiles_per_split=tiles_per_split)
    h1, s2p, ss2p = pl.pallas_call(
        k1,
        grid=(num_splits, tiles_per_split),
        in_specs=[tile1, rep1((1, hidden)), rep1((1, hidden)),
                  rep1((hidden, hidden)), rep1((1, hidden))],
        out_specs=(tile1, stat1, stat1),
        out_shape=(jax.ShapeDtypeStruct((n_pad, hidden), jnp.bfloat16),
                   jax.ShapeDtypeStruct((num_splits, hidden), jnp.float32),
                   jax.ShapeDtypeStruct((num_splits, hidden), jnp.float32)),
        compiler_params=pltpu.CompilerParams(
            dimension_semantics=("parallel", "arbitrary"),
            vmem_limit_bytes=budget),
        cost_estimate=pl.CostEstimate(
            flops=2 * n_pad * hidden * hidden,
            transcendentals=0,
            bytes_accessed=6 * n_pad * hidden + 2 * weight_bytes),
    )(hp, scale1, shift1, w1t, b1)

    # Reduce the per-core partials and fold BN2 into scale/shift (tiny XLA op).
    s2 = jnp.sum(s2p, axis=0, keepdims=True)
    ss2 = jnp.sum(ss2p, axis=0, keepdims=True)
    mean2 = s2 * inv_n
    var2 = jnp.maximum(ss2 * inv_n - mean2 * mean2, 0.0)
    scale2 = g2 * lax.rsqrt(var2 + BN_EPS)
    shift2 = be2 - mean2 * scale2

    tile2 = pl.BlockSpec((tm, hidden), lambda i: (i, 0))
    rep2 = lambda shape: pl.BlockSpec(shape, lambda i: (0,) * len(shape))
    out = pl.pallas_call(
        _pass2_kernel,
        grid=(num_tiles,),
        in_specs=[tile2, tile2, rep2((1, hidden)), rep2((1, hidden)),
                  rep2((hidden, hidden)), rep2((1, hidden))],
        out_specs=tile2,
        out_shape=jax.ShapeDtypeStruct((n_pad, hidden), x.dtype),
        compiler_params=pltpu.CompilerParams(
            dimension_semantics=("parallel",),
            vmem_limit_bytes=budget),
        cost_estimate=pl.CostEstimate(
            flops=2 * n_pad * hidden * hidden,
            transcendentals=0,
            bytes_accessed=10 * n_pad * hidden + 2 * weight_bytes),
    )(hp, h1, scale2, shift2, w2t, b2)

    if n_pad != n:
        out = out[:n]
    return out.reshape(orig_shape)


# ---------------------------------------------------------------------------
# Params / reference / test
# ---------------------------------------------------------------------------
def init_params(key, hidden):
    """Deterministic init matching FCResBlock(hidden, norm='bn') shapes."""
    k1, k2, k3, k4 = jax.random.split(key, 4)
    bound = 1.0 / math.sqrt(hidden)
    return {
        "g1": jnp.ones((hidden,), jnp.float32),
        "be1": jnp.zeros((hidden,), jnp.float32),
        "w1": jax.random.uniform(k1, (hidden, hidden), jnp.float32, -bound, bound),
        "b1": jax.random.uniform(k2, (hidden,), jnp.float32, -bound, bound),
        "g2": jnp.ones((hidden,), jnp.float32),
        "be2": jnp.zeros((hidden,), jnp.float32),
        "w2": jax.random.uniform(k3, (hidden, hidden), jnp.float32, -bound, bound),
        "b2": jax.random.uniform(k4, (hidden,), jnp.float32, -bound, bound),
    }


def fc_res_block_ref(x, params):
    """Pure-JAX, full-f32, PyTorch-faithful reference."""
    hidden = params["w1"].shape[0]
    h = x.reshape(-1, hidden).astype(jnp.float32)

    def bn(v, g, b):
        mu = jnp.mean(v, axis=0, keepdims=True)
        var = jnp.mean((v - mu) ** 2, axis=0, keepdims=True)
        return (v - mu) / jnp.sqrt(var + BN_EPS) * g + b

    y = bn(h, params["g1"], params["be1"])
    y = jnp.maximum(y, 0.0)
    y = y @ params["w1"].astype(jnp.float32).T + params["b1"]
    y = bn(y, params["g2"], params["be2"])
    y = jnp.maximum(y, 0.0)
    y = y @ params["w2"].astype(jnp.float32).T + params["b2"]
    return (h + y).reshape(x.shape).astype(x.dtype)


if __name__ == "__main__":
    key = jax.random.PRNGKey(0)
    k_x, k_p = jax.random.split(key)

    hidden = 128                                   # lane-dense (multiple of 128)
    x = jax.random.normal(k_x, (2, 72, hidden), jnp.float32)   # N = 144 rows
    params = init_params(k_p, hidden)
    kparams = prepare_params(params)               # one-time bf16/(in,out) weights

    ref = fc_res_block_ref(x, params)

    # Fused small-N path (auto-selected for this shape).
    run_fused = jax.jit(fc_res_block)
    out_f = jax.block_until_ready(run_fused(x, kparams))
    assert out_f.shape == x.shape and out_f.dtype == x.dtype
    err_f = float(jnp.max(jnp.abs(out_f.astype(jnp.float32) - ref.astype(jnp.float32))))
    assert err_f < 5e-2, f"fused path mismatch vs reference: max abs err {err_f}"

    # Tiled two-kernel path: block_rows=32 -> 5 tiles, 2 parallel splits,
    # padded-row masking exercised.
    run_tiled = jax.jit(functools.partial(fc_res_block, fused=False, block_rows=32))
    out_t = jax.block_until_ready(run_tiled(x, kparams))
    assert out_t.shape == x.shape and out_t.dtype == x.dtype
    err_t = float(jnp.max(jnp.abs(out_t.astype(jnp.float32) - ref.astype(jnp.float32))))
    assert err_t < 5e-2, f"tiled path mismatch vs reference: max abs err {err_t}"

    print("KERNEL_OK")
</pallas_src>

<mosaic_0001>
module attributes {stable_mosaic.version = 11 : i64} {
  func.func @_fused_kernel(%arg0: i32, %arg1: memref<144x128xf32, #tpu.memory_space<vmem>>, %arg2: memref<1x128xf32, #tpu.memory_space<vmem>>, %arg3: memref<1x128xf32, #tpu.memory_space<vmem>>, %arg4: memref<128x128xbf16, #tpu.memory_space<vmem>>, %arg5: memref<1x128xf32, #tpu.memory_space<vmem>>, %arg6: memref<1x128xf32, #tpu.memory_space<vmem>>, %arg7: memref<1x128xf32, #tpu.memory_space<vmem>>, %arg8: memref<128x128xbf16, #tpu.memory_space<vmem>>, %arg9: memref<1x128xf32, #tpu.memory_space<vmem>>, %arg10: memref<144x128xf32, #tpu.memory_space<vmem>>) attributes {dimension_semantics = [#tpu.dimension_semantics<arbitrary>], iteration_bounds = array<i64: 1>, scalar_prefetch = 0 : i64, scratch_operands = 0 : i64, tpu.core_type = #tpu.core_type<tc>, window_params = [{pipeline_mode = #tpu.pipeline_mode<synchronous>, transform_indices = @transform_0, window_bounds = array<i64: 144, 128>}, {pipeline_mode = #tpu.pipeline_mode<synchronous>, transform_indices = @transform_1, window_bounds = array<i64: 1, 128>}, {pipeline_mode = #tpu.pipeline_mode<synchronous>, transform_indices = @transform_2, window_bounds = array<i64: 1, 128>}, {pipeline_mode = #tpu.pipeline_mode<synchronous>, transform_indices = @transform_3, window_bounds = array<i64: 128, 128>}, {pipeline_mode = #tpu.pipeline_mode<synchronous>, transform_indices = @transform_4, window_bounds = array<i64: 1, 128>}, {pipeline_mode = #tpu.pipeline_mode<synchronous>, transform_indices = @transform_5, window_bounds = array<i64: 1, 128>}, {pipeline_mode = #tpu.pipeline_mode<synchronous>, transform_indices = @transform_6, window_bounds = array<i64: 1, 128>}, {pipeline_mode = #tpu.pipeline_mode<synchronous>, transform_indices = @transform_7, window_bounds = array<i64: 128, 128>}, {pipeline_mode = #tpu.pipeline_mode<synchronous>, transform_indices = @transform_8, window_bounds = array<i64: 1, 128>}, {pipeline_mode = #tpu.pipeline_mode<synchronous>, transform_indices = @transform_9, window_bounds = array<i64: 144, 128>}]} {
    %c0 = arith.constant 0 : index
    %c0_0 = arith.constant 0 : index
    %0 = vector.load %arg1[%c0, %c0_0] : memref<144x128xf32, #tpu.memory_space<vmem>>, vector<144x128xf32>
    %1 = tpu.iota {dimensions = array<i32: 0>} : vector<144x1xi32>
    %c144_i32 = arith.constant 144 : i32
    %2 = vector.broadcast %c144_i32 : i32 to vector<144x1xi32>
    %3 = arith.cmpi slt, %1, %2 : vector<144x1xi32>
    %cst = arith.constant dense<0.000000e+00> : vector<128xf32>
    %4 = vector.multi_reduction <add>, %0, %cst [0] : vector<144x128xf32> to vector<128xf32>
    %5 = vector.shape_cast %4 : vector<128xf32> to vector<1x128xf32>
    %6 = arith.mulf %0, %0 : vector<144x128xf32>
    %cst_1 = arith.constant dense<0.000000e+00> : vector<128xf32>
    %7 = vector.multi_reduction <add>, %6, %cst_1 [0] : vector<144x128xf32> to vector<128xf32>
    %8 = vector.shape_cast %7 : vector<128xf32> to vector<1x128xf32>
    %cst_2 = arith.constant 0.0069444445 : f32
    %9 = vector.broadcast %cst_2 : f32 to vector<1x128xf32>
    %10 = arith.mulf %5, %9 : vector<1x128xf32>
    %cst_3 = arith.constant 0.0069444445 : f32
    %11 = vector.broadcast %cst_3 : f32 to vector<1x128xf32>
    %12 = arith.mulf %8, %11 : vector<1x128xf32>
    %13 = arith.mulf %10, %10 : vector<1x128xf32>
    %14 = arith.subf %12, %13 : vector<1x128xf32>
    %cst_4 = arith.constant 0.000000e+00 : f32
    %15 = vector.broadcast %cst_4 : f32 to vector<1x128xf32>
    %16 = arith.maximumf %14, %15 : vector<1x128xf32>
    %c0_5 = arith.constant 0 : index
    %c0_6 = arith.constant 0 : index
    %17 = vector.load %arg2[%c0_5, %c0_6] : memref<1x128xf32, #tpu.memory_space<vmem>>, vector<1x128xf32>
    %cst_7 = arith.constant 9.99999974E-6 : f32
    %18 = vector.broadcast %cst_7 : f32 to vector<1x128xf32>
    %19 = arith.addf %16, %18 : vector<1x128xf32>
    %20 = math.rsqrt %19 : vector<1x128xf32>
    %21 = arith.mulf %17, %20 : vector<1x128xf32>
    %c0_8 = arith.constant 0 : index
    %c0_9 = arith.constant 0 : index
    %22 = vector.load %arg3[%c0_8, %c0_9] : memref<1x128xf32, #tpu.memory_space<vmem>>, vector<1x128xf32>
    %23 = arith.mulf %10, %21 : vector<1x128xf32>
    %24 = arith.subf %22, %23 : vector<1x128xf32>
    %25 = vector.broadcast %21 : vector<1x128xf32> to vector<144x128xf32>
    %26 = arith.mulf %0, %25 : vector<144x128xf32>
    %27 = vector.broadcast %24 : vector<1x128xf32> to vector<144x128xf32>
    %28 = arith.addf %26, %27 : vector<144x128xf32>
    %cst_10 = arith.constant 0.000000e+00 : f32
    %29 = vector.broadcast %cst_10 : f32 to vector<144x128xf32>
    %30 = arith.maximumf %28, %29 : vector<144x128xf32>
    %31 = arith.truncf %30 : vector<144x128xf32> to vector<144x128xbf16>
    %c0_11 = arith.constant 0 : index
    %c0_12 = arith.constant 0 : index
    %32 = vector.load %arg4[%c0_11, %c0_12] : memref<128x128xbf16, #tpu.memory_space<vmem>>, vector<128x128xbf16>
    %cst_13 = arith.constant dense<0.000000e+00> : vector<144x128xf32>
    %33 = tpu.matmul %31, %32, %cst_13 {dimension_numbers = #tpu.dot_dimension_numbers<[1], [0], [0], [1], [0, 0, 1, 1], [], []>} : vector<144x128xbf16>, vector<128x128xbf16>, vector<144x128xf32> -> vector<144x128xf32>
    %c0_14 = arith.constant 0 : index
    %c0_15 = arith.constant 0 : index
    %34 = vector.load %arg5[%c0_14, %c0_15] : memref<1x128xf32, #tpu.memory_space<vmem>>, vector<1x128xf32>
    %35 = vector.broadcast %34 : vector<1x128xf32> to vector<144x128xf32>
    %36 = arith.addf %33, %35 : vector<144x128xf32>
    %cst_16 = arith.constant 0.000000e+00 : f32
    %37 = vector.shape_cast %3 : vector<144x1xi1> to vector<144x1xi1>
    %38 = vector.broadcast %37 : vector<144x1xi1> to vector<144x128xi1>
    %39 = vector.broadcast %cst_16 : f32 to vector<144x128xf32>
    %40 = arith.select %38, %36, %39 : vector<144x128xi1>, vector<144x128xf32>
    %cst_17 = arith.constant dense<0.000000e+00> : vector<128xf32>
    %41 = vector.multi_reduction <add>, %40, %cst_17 [0] : vector<144x128xf32> to vector<128xf32>
    %42 = vector.shape_cast %41 : vector<128xf32> to vector<1x128xf32>
    %43 = arith.mulf %40, %40 : vector<144x128xf32>
    %cst_18 = arith.constant dense<0.000000e+00> : vector<128xf32>
    %44 = vector.multi_reduction <add>, %43, %cst_18 [0] : vector<144x128xf32> to vector<128xf32>
    %45 = vector.shape_cast %44 : vector<128xf32> to vector<1x128xf32>
    %cst_19 = arith.constant 0.0069444445 : f32
    %46 = vector.broadcast %cst_19 : f32 to vector<1x128xf32>
    %47 = arith.mulf %42, %46 : vector<1x128xf32>
    %cst_20 = arith.constant 0.0069444445 : f32
    %48 = vector.broadcast %cst_20 : f32 to vector<1x128xf32>
    %49 = arith.mulf %45, %48 : vector<1x128xf32>
    %50 = arith.mulf %47, %47 : vector<1x128xf32>
    %51 = arith.subf %49, %50 : vector<1x128xf32>
    %cst_21 = arith.constant 0.000000e+00 : f32
    %52 = vector.broadcast %cst_21 : f32 to vector<1x128xf32>
    %53 = arith.maximumf %51, %52 : vector<1x128xf32>
    %c0_22 = arith.constant 0 : index
    %c0_23 = arith.constant 0 : index
    %54 = vector.load %arg6[%c0_22, %c0_23] : memref<1x128xf32, #tpu.memory_space<vmem>>, vector<1x128xf32>
    %cst_24 = arith.constant 9.99999974E-6 : f32
    %55 = vector.broadcast %cst_24 : f32 to vector<1x128xf32>
    %56 = arith.addf %53, %55 : vector<1x128xf32>
    %57 = math.rsqrt %56 : vector<1x128xf32>
    %58 = arith.mulf %54, %57 : vector<1x128xf32>
    %c0_25 = arith.constant 0 : index
    %c0_26 = arith.constant 0 : index
    %59 = vector.load %arg7[%c0_25, %c0_26] : memref<1x128xf32, #tpu.memory_space<vmem>>, vector<1x128xf32>
    %60 = arith.mulf %47, %58 : vector<1x128xf32>
    %61 = arith.subf %59, %60 : vector<1x128xf32>
    %62 = vector.broadcast %58 : vector<1x128xf32> to vector<144x128xf32>
    %63 = arith.mulf %36, %62 : vector<144x128xf32>
    %64 = vector.broadcast %61 : vector<1x128xf32> to vector<144x128xf32>
    %65 = arith.addf %63, %64 : vector<144x128xf32>
    %cst_27 = arith.constant 0.000000e+00 : f32
    %66 = vector.broadcast %cst_27 : f32 to vector<144x128xf32>
    %67 = arith.maximumf %65, %66 : vector<144x128xf32>
    %68 = arith.truncf %67 : vector<144x128xf32> to vector<144x128xbf16>
    %c0_28 = arith.constant 0 : index
    %c0_29 = arith.constant 0 : index
    %69 = vector.load %arg8[%c0_28, %c0_29] : memref<128x128xbf16, #tpu.memory_space<vmem>>, vector<128x128xbf16>
    %cst_30 = arith.constant dense<0.000000e+00> : vector<144x128xf32>
    %70 = tpu.matmul %68, %69, %cst_30 {dimension_numbers = #tpu.dot_dimension_numbers<[1], [0], [0], [1], [0, 0, 1, 1], [], []>} : vector<144x128xbf16>, vector<128x128xbf16>, vector<144x128xf32> -> vector<144x128xf32>
    %c0_31 = arith.constant 0 : index
    %c0_32 = arith.constant 0 : index
    %71 = vector.load %arg9[%c0_31, %c0_32] : memref<1x128xf32, #tpu.memory_space<vmem>>, vector<1x128xf32>
    %72 = vector.broadcast %71 : vector<1x128xf32> to vector<144x128xf32>
    %73 = arith.addf %70, %72 : vector<144x128xf32>
    %74 = arith.addf %0, %73 : vector<144x128xf32>
    %c0_33 = arith.constant 0 : index
    %c0_34 = arith.constant 0 : index
    %75 = vector.load %arg10[%c0_33, %c0_34] : memref<144x128xf32, #tpu.memory_space<vmem>>, vector<144x128xf32>
    tpu.vector_store %arg10[%c0_33, %c0_34], %74 {strides = array<i32>} : memref<144x128xf32, #tpu.memory_space<vmem>>, vector<144x128xf32>,
    return
  }
  func.func @transform_0(%arg0: i32) -> (i32, i32) {
    %c0_i32 = arith.constant 0 : i32
    %c0_i32_0 = arith.constant 0 : i32
    %c0_i32_1 = arith.constant 0 : i32
    return %c0_i32, %c0_i32_0 : i32, i32
  }
  func.func @transform_1(%arg0: i32) -> (i32, i32) {
    %c0_i32 = arith.constant 0 : i32
    %c0_i32_0 = arith.constant 0 : i32
    %c0_i32_1 = arith.constant 0 : i32
    return %c0_i32, %c0_i32_0 : i32, i32
  }
  func.func @transform_2(%arg0: i32) -> (i32, i32) {
    %c0_i32 = arith.constant 0 : i32
    %c0_i32_0 = arith.constant 0 : i32
    %c0_i32_1 = arith.constant 0 : i32
    return %c0_i32, %c0_i32_0 : i32, i32
  }
  func.func @transform_3(%arg0: i32) -> (i32, i32) {
    %c0_i32 = arith.constant 0 : i32
    %c0_i32_0 = arith.constant 0 : i32
    %c0_i32_1 = arith.constant 0 : i32
    return %c0_i32, %c0_i32_0 : i32, i32
  }
  func.func @transform_4(%arg0: i32) -> (i32, i32) {
    %c0_i32 = arith.constant 0 : i32
    %c0_i32_0 = arith.constant 0 : i32
    %c0_i32_1 = arith.constant 0 : i32
    return %c0_i32, %c0_i32_0 : i32, i32
  }
  func.func @transform_5(%arg0: i32) -> (i32, i32) {
    %c0_i32 = arith.constant 0 : i32
    %c0_i32_0 = arith.constant 0 : i32
    %c0_i32_1 = arith.constant 0 : i32
    return %c0_i32, %c0_i32_0 : i32, i32
  }
  func.func @transform_6(%arg0: i32) -> (i32, i32) {
    %c0_i32 = arith.constant 0 : i32
    %c0_i32_0 = arith.constant 0 : i32
    %c0_i32_1 = arith.constant 0 : i32
    return %c0_i32, %c0_i32_0 : i32, i32
  }
  func.func @transform_7(%arg0: i32) -> (i32, i32) {
    %c0_i32 = arith.constant 0 : i32
    %c0_i32_0 = arith.constant 0 : i32
    %c0_i32_1 = arith.constant 0 : i32
    return %c0_i32, %c0_i32_0 : i32, i32
  }
  func.func @transform_8(%arg0: i32) -> (i32, i32) {
    %c0_i32 = arith.constant 0 : i32
    %c0_i32_0 = arith.constant 0 : i32
    %c0_i32_1 = arith.constant 0 : i32
    return %c0_i32, %c0_i32_0 : i32, i32
  }
  func.func @transform_9(%arg0: i32) -> (i32, i32) {
    %c0_i32 = arith.constant 0 : i32
    %c0_i32_0 = arith.constant 0 : i32
    %c0_i32_1 = arith.constant 0 : i32
    return %c0_i32, %c0_i32_0 : i32, i32
  }
}

</mosaic_0001>

<llo_original>
// kernel: fc_res_block.1
$region0: #{fc_res_block.1}
  #allocation0 [shape = 'u32[]', space=smem, size = 0x4, offset = 0x4, fixed_abs, tag = 'smem constant byte address 0x4 - core index']
  #allocation1 [shape = 'u32[144,128]{1,0:T(1,128)}', space=vmem, size = 0x12000, scoped, tag = 'internal scratch']
  %s0 = inlined_call_operand.hbm [shape: f32[144,128], index: 0, kind: input, shape index: {}]
  %s1 = inlined_call_operand.vmem [shape: f32[1,128], index: 1, kind: input, shape index: {}]
  %s2 = inlined_call_operand.vmem [shape: f32[1,128], index: 2, kind: input, shape index: {}]
  %s3 = inlined_call_operand.hbm [shape: bf16[128,128], index: 3, kind: input, shape index: {}]
  %s4 = inlined_call_operand.vmem [shape: f32[1,128], index: 4, kind: input, shape index: {}]
  %s5 = inlined_call_operand.vmem [shape: f32[1,128], index: 5, kind: input, shape index: {}]
  %s6 = inlined_call_operand.vmem [shape: f32[1,128], index: 6, kind: input, shape index: {}]
  %s7 = inlined_call_operand.hbm [shape: bf16[128,128], index: 7, kind: input, shape index: {}]
  %s8 = inlined_call_operand.vmem [shape: f32[1,128], index: 8, kind: input, shape index: {}]
  %s9 = inlined_call_operand.hbm [shape: f32[144,128], index: 9, kind: output, shape index: {}]
  %s10 = sld [smem:[#allocation0]]
  $region58: #{fc_res_block.1} parent=0
    _
  %s12 = ssub.s32 1, %s10
  %s13 = scalar_select 0, %s12, %s10
  $region1: #{fc_res_block.1} parent=0
    #allocation2 [shape = 'u8[73728]{0}', space=vmem, size = 0x12000, scoped, tag = 'input window, operand 0, single buffered']
    #allocation3 [shape = 's32[1]{0}', space=sflag, size = 0x4, scoped, tag = 'scoped memory for fc_res_block.1']
    #allocation4 [shape = 's32[1]{0}', space=sflag, size = 0x4, scoped, tag = 'scoped memory for fc_res_block.1']
    #allocation5 [shape = 'u8[32768]{0}', space=vmem, size = 0x8000, scoped, tag = 'input window, operand 3, single buffered']
    #allocation6 [shape = 's32[1]{0}', space=sflag, size = 0x4, scoped, tag = 'scoped memory for fc_res_block.1']
    #allocation7 [shape = 'u8[32768]{0}', space=vmem, size = 0x8000, scoped, tag = 'input window, operand 7, single buffered']
    #allocation8 [shape = 'u8[73728]{0}', space=vmem, size = 0x12000, scoped, tag = 'output window, operand 0, single buffered']
    %14 = vsyncpa [#allocation3], 0
    %15 = vsyncpa [#allocation6], 0
    %16 = vsyncpa [#allocation4], 0
    // Predicated region
    $region2: #{fc_res_block.1} parent=1 // pred_check
      _
    $region3: #{fc_res_block.1} parent=1 // pred_check_branch
      %18 = sbr.rel (0) target = $region5
    $region4: #{fc_res_block.1} parent=1 // pred_region
      %s20 = ssub.s32 2304, 2304
      %21 = vsyncadd [#allocation3], %s20
      %s22 = sshll.u32 [#allocation2], 4
      %s23 = int_to_ptr.vmem [resolvable:$true] %s22
      %28 = dma.hbm_to_vmem [thread:$0]  %s0, 2304, %s23, [#allocation3], 128, 128, 8
    $region5: #{fc_res_block.1} parent=1 // pred_fallthru
      _
    // Predicated region
    $region6: #{fc_res_block.1} parent=1 // pred_check
      _
    $region7: #{fc_res_block.1} parent=1 // pred_check_branch
      %30 = sbr.rel (0) target = $region9
    $region8: #{fc_res_block.1} parent=1 // pred_region
      _
    $region9: #{fc_res_block.1} parent=1 // pred_fallthru
      _
    // Predicated region
    $region10: #{fc_res_block.1} parent=1 // pred_check
      _
    $region11: #{fc_res_block.1} parent=1 // pred_check_branch
      %32 = sbr.rel (0) target = $region13
    $region12: #{fc_res_block.1} parent=1 // pred_region
      _
    $region13: #{fc_res_block.1} parent=1 // pred_fallthru
      _
    // Predicated region
    $region14: #{fc_res_block.1} parent=1 // pred_check
      _
    $region15: #{fc_res_block.1} parent=1 // pred_check_branch
      %34 = sbr.rel (0) target = $region17
    $region16: #{fc_res_block.1} parent=1 // pred_region
      %s36 = ssub.s32 1024, 1024
      %37 = vsyncadd [#allocation6], %s36
      %s38 = sshll.u32 [#allocation5], 4
      %s39 = int_to_ptr.vmem [resolvable:$true] %s38
      %44 = dma.hbm_to_vmem [thread:$0]  %s3, 1024, %s39, [#allocation6], 64, 64, 4
    $region17: #{fc_res_block.1} parent=1 // pred_fallthru
      _
    // Predicated region
    $region18: #{fc_res_block.1} parent=1 // pred_check
      _
    $region19: #{fc_res_block.1} parent=1 // pred_check_branch
      %46 = sbr.rel (0) target = $region21
    $region20: #{fc_res_block.1} parent=1 // pred_region
      _
    $region21: #{fc_res_block.1} parent=1 // pred_fallthru
      _
    // Predicated region
    $region22: #{fc_res_block.1} parent=1 // pred_check
      _
    $region23: #{fc_res_block.1} parent=1 // pred_check_branch
      %48 = sbr.rel (0) target = $region25
    $region24: #{fc_res_block.1} parent=1 // pred_region
      _
    $region25: #{fc_res_block.1} parent=1 // pred_fallthru
      _
    // Predicated region
    $region26: #{fc_res_block.1} parent=1 // pred_check
      _
    $region27: #{fc_res_block.1} parent=1 // pred_check_branch
      %50 = sbr.rel (0) target = $region29
    $region28: #{fc_res_block.1} parent=1 // pred_region
      _
    $region29: #{fc_res_block.1} parent=1 // pred_fallthru
      _
    // Predicated region
    $region30: #{fc_res_block.1} parent=1 // pred_check
      _
    $region31: #{fc_res_block.1} parent=1 // pred_check_branch
      %52 = sbr.rel (0) target = $region33
    $region32: #{fc_res_block.1} parent=1 // pred_region
      %s54 = ssub.s32 1024, 1024
      %55 = vsyncadd [#allocation6], %s54
      %s56 = sshll.u32 [#allocation7], 4
      %s57 = int_to_ptr.vmem [resolvable:$true] %s56
      %62 = dma.hbm_to_vmem [thread:$0]  %s7, 1024, %s57, [#allocation6], 64, 64, 4
    $region33: #{fc_res_block.1} parent=1 // pred_fallthru
      _
    // Predicated region
    $region34: #{fc_res_block.1} parent=1 // pred_check
      _
    $region35: #{fc_res_block.1} parent=1 // pred_check_branch
      %64 = sbr.rel (0) target = $region37
    $region36: #{fc_res_block.1} parent=1 // pred_region
      _
    $region37: #{fc_res_block.1} parent=1 // pred_fallthru
      _
    // Predicated region
    $region38: #{fc_res_block.1} parent=1 // pred_check
      _
    $region39: #{fc_res_block.1} parent=1 // pred_check_branch
      %66 = sbr.rel (0) target = $region41
    $region40: #{fc_res_block.1} parent=1 // pred_region
      %67 = dma.done [#allocation3], 2304
    $region41: #{fc_res_block.1} parent=1 // pred_fallthru
      _
    // Predicated region
    $region42: #{fc_res_block.1} parent=1 // pred_check
      _
    $region43: #{fc_res_block.1} parent=1 // pred_check_branch
      %69 = sbr.rel (0) target = $region45
    $region44: #{fc_res_block.1} parent=1 // pred_region
      %70 = dma.done [#allocation6], 1024
    $region45: #{fc_res_block.1} parent=1 // pred_fallthru
      _
    // Predicated region
    $region46: #{fc_res_block.1} parent=1 // pred_check
      _
    $region47: #{fc_res_block.1} parent=1 // pred_check_branch
      %72 = sbr.rel (0) target = $region49
    $region48: #{fc_res_block.1} parent=1 // pred_region
      %73 = dma.done [#allocation6], 1024
    $region49: #{fc_res_block.1} parent=1 // pred_fallthru
      _
    %v75 = vld [vmem:[#allocation2] sm:$0xff]
    %v76 = vld [vmem:[#allocation2 + $0x8] sm:$0xff]
    %v77 = vld [vmem:[#allocation2 + $0x10] sm:$0xff]
    %v78 = vld [vmem:[#allocation2 + $0x18] sm:$0xff]
    %v79 = vld [vmem:[#allocation2 + $0x20] sm:$0xff]
    %v80 = vld [vmem:[#allocation2 + $0x28] sm:$0xff]
    %v81 = vld [vmem:[#allocation2 + $0x30] sm:$0xff]
    %v82 = vld [vmem:[#allocation2 + $0x38] sm:$0xff]
    %v83 = vld [vmem:[#allocation2 + $0x40] sm:$0xff]
    %v84 = vld [vmem:[#allocation2 + $0x48] sm:$0xff]
    %v85 = vld [vmem:[#allocation2 + $0x50] sm:$0xff]
    %v86 = vld [vmem:[#allocation2 + $0x58] sm:$0xff]
    %v87 = vld [vmem:[#allocation2 + $0x60] sm:$0xff]
    %v88 = vld [vmem:[#allocation2 + $0x68] sm:$0xff]
    %v89 = vld [vmem:[#allocation2 + $0x70] sm:$0xff]
    %v90 = vld [vmem:[#allocation2 + $0x78] sm:$0xff]
    %v91 = vld [vmem:[#allocation2 + $0x80] sm:$0xff]
    %v92 = vld [vmem:[#allocation2 + $0x88] sm:$0xff]
    %v93 = vlaneseq
    %v94 = vshrl.u32 %v93, 7
    %v95 = vadd.s32 %v94, 8
    %v96 = vadd.s32 %v94, 16
    %v97 = vadd.s32 %v94, 24
    %v98 = vadd.s32 %v94, 32
    %v99 = vadd.s32 %v94, 40
    %v100 = vadd.s32 %v94, 48
    %v101 = vadd.s32 %v94, 56
    %v102 = vadd.s32 %v94, 64
    %v103 = vadd.s32 %v94, 72
    %v104 = vadd.s32 %v94, 80
    %v105 = vadd.s32 %v94, 88
    %v106 = vadd.s32 %v94, 96
    %v107 = vadd.s32 %v94, 104
    %v108 = vadd.s32 %v94, 112
    %v109 = vadd.s32 %v94, 120
    %v110 = vadd.s32 %v94, 128
    %v111 = vadd.s32 %v94, 136
    %vm112 = vcmp.lt.s32.totalorder %v94, 144
    %vm113 = vcmp.lt.s32.totalorder %v95, 144
    %vm114 = vcmp.lt.s32.totalorder %v96, 144
    %vm115 = vcmp.lt.s32.totalorder %v97, 144
    %vm116 = vcmp.lt.s32.totalorder %v98, 144
    %vm117 = vcmp.lt.s32.totalorder %v99, 144
    %vm118 = vcmp.lt.s32.totalorder %v100, 144
    %vm119 = vcmp.lt.s32.totalorder %v101, 144
    %vm120 = vcmp.lt.s32.totalorder %v102, 144
    %vm121 = vcmp.lt.s32.totalorder %v103, 144
    %vm122 = vcmp.lt.s32.totalorder %v104, 144
    %vm123 = vcmp.lt.s32.totalorder %v105, 144
    %vm124 = vcmp.lt.s32.totalorder %v106, 144
    %vm125 = vcmp.lt.s32.totalorder %v107, 144
    %vm126 = vcmp.lt.s32.totalorder %v108, 144
    %vm127 = vcmp.lt.s32.totalorder %v109, 144
    %vm128 = vcmp.lt.s32.totalorder %v110, 144
    %vm129 = vcmp.lt.s32.totalorder %v111, 144
    %v130 = vadd.f32 %v75, %v76
    %v131 = vadd.f32 %v130, %v77
    %v132 = vadd.f32 %v131, %v78
    %v133 = vadd.f32 %v132, %v79
    %v134 = vadd.f32 %v133, %v80
    %v135 = vadd.f32 %v134, %v81
    %v136 = vadd.f32 %v135, %v82
    %v137 = vadd.f32 %v136, %v83
    %v138 = vadd.f32 %v137, %v84
    %v139 = vadd.f32 %v138, %v85
    %v140 = vadd.f32 %v139, %v86
    %v141 = vadd.f32 %v140, %v87
    %v142 = vadd.f32 %v141, %v88
    %v143 = vadd.f32 %v142, %v89
    %v144 = vadd.f32 %v143, %v90
    %v145 = vadd.f32 %v144, %v91
    %v146 = vadd.f32 %v145, %v92
    %v147 = vrot.slane %v146, 4
    %v148 = vadd.f32 %v146, %v147
    %v149 = vrot.slane %v148, 2
    %v150 = vadd.f32 %v148, %v149
    %v151 = vrot.slane %v150, 1
    %v152 = vadd.f32 %v150, %v151
    %v153 = vmul.f32 %v75, %v75
    %v154 = vmul.f32 %v76, %v76
    %v155 = vmul.f32 %v77, %v77
    %v156 = vmul.f32 %v78, %v78
    %v157 = vmul.f32 %v79, %v79
    %v158 = vmul.f32 %v80, %v80
    %v159 = vmul.f32 %v81, %v81
    %v160 = vmul.f32 %v82, %v82
    %v161 = vmul.f32 %v83, %v83
    %v162 = vmul.f32 %v84, %v84
    %v163 = vmul.f32 %v85, %v85
    %v164 = vmul.f32 %v86, %v86
    %v165 = vmul.f32 %v87, %v87
    %v166 = vmul.f32 %v88, %v88
    %v167 = vmul.f32 %v89, %v89
    %v168 = vmul.f32 %v90, %v90
    %v169 = vmul.f32 %v91, %v91
    %v170 = vmul.f32 %v92, %v92
    %v171 = vadd.f32 %v153, %v154
    %v172 = vadd.f32 %v171, %v155
    %v173 = vadd.f32 %v172, %v156
    %v174 = vadd.f32 %v173, %v157
    %v175 = vadd.f32 %v174, %v158
    %v176 = vadd.f32 %v175, %v159
    %v177 = vadd.f32 %v176, %v160
    %v178 = vadd.f32 %v177, %v161
    %v179 = vadd.f32 %v178, %v162
    %v180 = vadd.f32 %v179, %v163
    %v181 = vadd.f32 %v180, %v164
    %v182 = vadd.f32 %v181, %v165
    %v183 = vadd.f32 %v182, %v166
    %v184 = vadd.f32 %v183, %v167
    %v185 = vadd.f32 %v184, %v168
    %v186 = vadd.f32 %v185, %v169
    %v187 = vadd.f32 %v186, %v170
    %v188 = vrot.slane %v187, 4
    %v189 = vadd.f32 %v187, %v188
    %v190 = vrot.slane %v189, 2
    %v191 = vadd.f32 %v189, %v190
    %v192 = vrot.slane %v191, 1
    %v193 = vadd.f32 %v191, %v192
    %v194 = vmul.f32 %v152, 0.0069444445
    %v195 = vmul.f32 %v193, 0.0069444445
    %v196 = vmul.f32 %v194, %v194
    %v197 = vsub.f32 %v195, %v196
    %v198 = vmax.f32 %v197, 0.0
    %v199 = vld [vmem:[%s1] sm:$0x1]
    %v200 = vadd.f32 %v198, 1e-05
    %v201 = vrsqrt.pop %v200
    %v202 = vmul.f32 %v199, %v201
    %v203 = vld [vmem:[%s2] sm:$0x1]
    %v204 = vmul.f32 %v194, %v202
    %v205 = vsub.f32 %v203, %v204
    %v207 = vlaneseq
    %v208 = vshrl.u32 %v207, 7
    %v209 = vsub.s32 0, %v208
    %v210 = vrot.slane %v202, %v209
    %v212 = vmul.f32 %v75, %v210
    %v213 = vmul.f32 %v76, %v210
    %v214 = vmul.f32 %v77, %v210
    %v215 = vmul.f32 %v78, %v210
    %v216 = vmul.f32 %v79, %v210
    %v217 = vmul.f32 %v80, %v210
    %v218 = vmul.f32 %v81, %v210
    %v219 = vmul.f32 %v82, %v210
    %v220 = vmul.f32 %v83, %v210
    %v221 = vmul.f32 %v84, %v210
    %v222 = vmul.f32 %v85, %v210
    %v223 = vmul.f32 %v86, %v210
    %v224 = vmul.f32 %v87, %v210
    %v225 = vmul.f32 %v88, %v210
    %v226 = vmul.f32 %v89, %v210
    %v227 = vmul.f32 %v90, %v210
    %v228 = vmul.f32 %v91, %v210
    %v229 = vmul.f32 %v92, %v210
    %v231 = vlaneseq
    %v232 = vshrl.u32 %v231, 7
    %v233 = vsub.s32 0, %v232
    %v234 = vrot.slane %v205, %v233
    %v236 = vadd.f32 %v212, %v234
    %v237 = vadd.f32 %v213, %v234
    %v238 = vadd.f32 %v214, %v234
    %v239 = vadd.f32 %v215, %v234
    %v240 = vadd.f32 %v216, %v234
    %v241 = vadd.f32 %v217, %v234
    %v242 = vadd.f32 %v218, %v234
    %v243 = vadd.f32 %v219, %v234
    %v244 = vadd.f32 %v220, %v234
    %v245 = vadd.f32 %v221, %v234
    %v246 = vadd.f32 %v222, %v234
    %v247 = vadd.f32 %v223, %v234
    %v248 = vadd.f32 %v224, %v234
    %v249 = vadd.f32 %v225, %v234
    %v250 = vadd.f32 %v226, %v234
    %v251 = vadd.f32 %v227, %v234
    %v252 = vadd.f32 %v228, %v234
    %v253 = vadd.f32 %v229, %v234
    %v254 = vmax.f32 %v236, 0.0
    %v255 = vmax.f32 %v237, 0.0
    %v256 = vmax.f32 %v238, 0.0
    %v257 = vmax.f32 %v239, 0.0
    %v258 = vmax.f32 %v240, 0.0
    %v259 = vmax.f32 %v241, 0.0
    %v260 = vmax.f32 %v242, 0.0
    %v261 = vmax.f32 %v243, 0.0
    %v262 = vmax.f32 %v244, 0.0
    %v263 = vmax.f32 %v245, 0.0
    %v264 = vmax.f32 %v246, 0.0
    %v265 = vmax.f32 %v247, 0.0
    %v266 = vmax.f32 %v248, 0.0
    %v267 = vmax.f32 %v249, 0.0
    %v268 = vmax.f32 %v250, 0.0
    %v269 = vmax.f32 %v251, 0.0
    %v270 = vmax.f32 %v252, 0.0
    %v271 = vmax.f32 %v253, 0.0
    %v272 = vpack.c.bf16 %v255, %v254
    %v273 = vpack.c.bf16 %v257, %v256
    %v274 = vpack.c.bf16 %v259, %v258
    %v275 = vpack.c.bf16 %v261, %v260
    %v276 = vpack.c.bf16 %v263, %v262
    %v277 = vpack.c.bf16 %v265, %v264
    %v278 = vpack.c.bf16 %v267, %v266
    %v279 = vpack.c.bf16 %v269, %v268
    %v280 = vpack.c.bf16 %v271, %v270
    %v281 = vld [vmem:[#allocation5] sm:$0xf]
    %v282 = vld [vmem:[#allocation5 + $0x4] sm:$0xf]
    %v283 = vld [vmem:[#allocation5 + $0x8] sm:$0xf]
    %v284 = vld [vmem:[#allocation5 + $0xc] sm:$0xf]
    %v285 = vld [vmem:[#allocation5 + $0x10] sm:$0xf]
    %v286 = vld [vmem:[#allocation5 + $0x14] sm:$0xf]
    %v287 = vld [vmem:[#allocation5 + $0x18] sm:$0xf]
    %v288 = vld [vmem:[#allocation5 + $0x1c] sm:$0xf]
    %v289 = vld [vmem:[#allocation5 + $0x20] sm:$0xf]
    %v290 = vld [vmem:[#allocation5 + $0x24] sm:$0xf]
    %v291 = vld [vmem:[#allocation5 + $0x28] sm:$0xf]
    %v292 = vld [vmem:[#allocation5 + $0x2c] sm:$0xf]
    %v293 = vld [vmem:[#allocation5 + $0x30] sm:$0xf]
    %v294 = vld [vmem:[#allocation5 + $0x34] sm:$0xf]
    %v295 = vld [vmem:[#allocation5 + $0x38] sm:$0xf]
    %v296 = vld [vmem:[#allocation5 + $0x3c] sm:$0xf]
    %v297 = vld [vmem:[%s4] sm:$0x1]
    %v299 = vlaneseq
    %v300 = vshrl.u32 %v299, 7
    %v301 = vsub.s32 0, %v300
    %v302 = vrot.slane %v297, %v301
    %v320 = vunpack.c.l.b16 %v281
    %v321 = vunpack.c.l.b16 %v282
    %v322 = vunpack.c.l.b16 %v283
    %v323 = vunpack.c.l.b16 %v284
    %v324 = vunpack.c.l.b16 %v285
    %v325 = vunpack.c.l.b16 %v286
    %v326 = vunpack.c.l.b16 %v287
    %v327 = vunpack.c.l.b16 %v288
    %v328 = vunpack.c.l.b16 %v289
    %v329 = vunpack.c.l.b16 %v290
    %v330 = vunpack.c.l.b16 %v291
    %v331 = vunpack.c.l.b16 %v292
    %v332 = vunpack.c.l.b16 %v293
    %v333 = vunpack.c.l.b16 %v294
    %v334 = vunpack.c.l.b16 %v295
    %v335 = vunpack.c.l.b16 %v296
    %v336 = vpack.c.b16 %v321, %v320
    %v337 = vpack.c.b16 %v323, %v322
    %v338 = vpack.c.b16 %v325, %v324
    %v339 = vpack.c.b16 %v327, %v326
    %v340 = vpack.c.b16 %v329, %v328
    %v341 = vpack.c.b16 %v331, %v330
    %v342 = vpack.c.b16 %v333, %v332
    %v343 = vpack.c.b16 %v335, %v334
    %352 = vmatprep.subr.bf16.mxu0 0
    %353 = vmatpush1.bf16.msra.mxu0 %v336
    %354 = vmatprep.subr.bf16.mxu0 0
    %355 = vmatpush1.bf16.msra.mxu0 %v337
    %356 = vmatprep.subr.bf16.mxu0 0
    %357 = vmatpush1.bf16.msra.mxu0 %v338
    %358 = vmatprep.subr.bf16.mxu0 0
    %359 = vmatpush1.bf16.msra.mxu0 %v339
    %360 = vmatprep.subr.bf16.mxu0 0
    %361 = vmatpush1.bf16.msra.mxu0 %v340
    %362 = vmatprep.subr.bf16.mxu0 0
    %363 = vmatpush1.bf16.msra.mxu0 %v341
    %364 = vmatprep.subr.bf16.mxu0 0
    %365 = vmatpush1.bf16.msra.mxu0 %v342
    %366 = vmatprep.subr.bf16.mxu0 0
    %367 = vmatpush1.bf16.msra.mxu0 %v343
    %368 = vmatprep.subr.bf16.mxu0 0
    %369 = vmatpush1.bf16.msra.mxu0 0
    %370 = vmatprep.subr.bf16.mxu0 0
    %371 = vmatpush1.bf16.msra.mxu0 0
    %372 = vmatprep.subr.bf16.mxu0 0
    %373 = vmatpush1.bf16.msra.mxu0 0
    %374 = vmatprep.subr.bf16.mxu0 0
    %375 = vmatpush1.bf16.msra.mxu0 0
    %376 = vmatprep.subr.bf16.mxu0 0
    %377 = vmatpush1.bf16.msra.mxu0 0
    %378 = vmatprep.subr.bf16.mxu0 0
    %379 = vmatpush1.bf16.msra.mxu0 0
    %380 = vmatprep.subr.bf16.mxu0 0
    %381 = vmatpush1.bf16.msra.mxu0 0
    %382 = vmatprep.subr.bf16.mxu0 0
    %383 = vmatpush1.bf16.msra.mxu0 0
    %384 = vmatprep.mubr.bf16.mxu0 0
    %385 = vmatmul.mubr.bf16.gmra.mrb[0].mxu0 %v272
    %v386 = vpop.f32.mrb[0].mxu0
    %v387 = vadd.f32 %v302, %v386
    %v388 = vpop.f32.mrb[0].mxu0
    %v389 = vpop.f32.mrb[0].mxu0
    %v390 = vadd.f32 %v302, %v389
    %v391 = vpop.f32.mrb[0].mxu0
    %392 = vmatprep.mubr.bf16.mxu0 0
    %393 = vmatmul.mubr.bf16.gmra.mrb[0].mxu0 %v273
    %v394 = vpop.f32.mrb[0].mxu0
    %v395 = vadd.f32 %v302, %v394
    %v396 = vpop.f32.mrb[0].mxu0
    %v397 = vpop.f32.mrb[0].mxu0
    %v398 = vadd.f32 %v302, %v397
    %v399 = vpop.f32.mrb[0].mxu0
    %400 = vmatprep.mubr.bf16.mxu0 0
    %401 = vmatmul.mubr.bf16.gmra.mrb[0].mxu0 %v274
    %v402 = vpop.f32.mrb[0].mxu0
    %v403 = vadd.f32 %v302, %v402
    %v404 = vpop.f32.mrb[0].mxu0
    %v405 = vpop.f32.mrb[0].mxu0
    %v406 = vadd.f32 %v302, %v405
    %v407 = vpop.f32.mrb[0].mxu0
    %408 = vmatprep.mubr.bf16.mxu0 0
    %409 = vmatmul.mubr.bf16.gmra.mrb[0].mxu0 %v275
    %v410 = vpop.f32.mrb[0].mxu0
    %v411 = vadd.f32 %v302, %v410
    %v412 = vpop.f32.mrb[0].mxu0
    %v413 = vpop.f32.mrb[0].mxu0
    %v414 = vadd.f32 %v302, %v413
    %v415 = vpop.f32.mrb[0].mxu0
    %416 = vmatprep.mubr.bf16.mxu0 0
    %417 = vmatmul.mubr.bf16.gmra.mrb[0].mxu0 %v276
    %v418 = vpop.f32.mrb[0].mxu0
    %v419 = vadd.f32 %v302, %v418
    %v420 = vpop.f32.mrb[0].mxu0
    %v421 = vpop.f32.mrb[0].mxu0
    %v422 = vadd.f32 %v302, %v421
    %v423 = vpop.f32.mrb[0].mxu0
    %424 = vmatprep.mubr.bf16.mxu0 0
    %425 = vmatmul.mubr.bf16.gmra.mrb[0].mxu0 %v277
    %v426 = vpop.f32.mrb[0].mxu0
    %v427 = vadd.f32 %v302, %v426
    %v428 = vpop.f32.mrb[0].mxu0
    %v429 = vpop.f32.mrb[0].mxu0
    %v430 = vadd.f32 %v302, %v429
    %v431 = vpop.f32.mrb[0].mxu0
    %432 = vmatprep.mubr.bf16.mxu0 0
    %433 = vmatmul.mubr.bf16.gmra.mrb[0].mxu0 %v278
    %v434 = vpop.f32.mrb[0].mxu0
    %v435 = vadd.f32 %v302, %v434
    %v436 = vpop.f32.mrb[0].mxu0
    %v437 = vpop.f32.mrb[0].mxu0
    %v438 = vadd.f32 %v302, %v437
    %v439 = vpop.f32.mrb[0].mxu0
    %440 = vmatprep.mubr.bf16.mxu0 0
    %441 = vmatmul.mubr.bf16.gmra.mrb[0].mxu0 %v279
    %v442 = vpop.f32.mrb[0].mxu0
    %v443 = vadd.f32 %v302, %v442
    %v444 = vpop.f32.mrb[0].mxu0
    %v445 = vpop.f32.mrb[0].mxu0
    %v446 = vadd.f32 %v302, %v445
    %v447 = vpop.f32.mrb[0].mxu0
    %448 = vmatprep.mubr.bf16.mxu0 0
    %449 = vmatmul.mubr.bf16.gmra.mrb[0].mxu0 %v280
    %v450 = vpop.f32.mrb[0].mxu0
    %v451 = vadd.f32 %v302, %v450
    %v452 = vpop.f32.mrb[0].mxu0
    %v453 = vpop.f32.mrb[0].mxu0
    %v454 = vadd.f32 %v302, %v453
    %v455 = vpop.f32.mrb[0].mxu0
    %456 = vdwg.mxu0
    %v457 = vsel %vm112, 1, 0
    %v458 = vsel %vm113, 1, 0
    %v459 = vsel %vm114, 1, 0
    %v460 = vsel %vm115, 1, 0
    %v461 = vsel %vm116, 1, 0
    %v462 = vsel %vm117, 1, 0
    %v463 = vsel %vm118, 1, 0
    %v464 = vsel %vm119, 1, 0
    %v465 = vsel %vm120, 1, 0
    %v466 = vsel %vm121, 1, 0
    %v467 = vsel %vm122, 1, 0
    %v468 = vsel %vm123, 1, 0
    %v469 = vsel %vm124, 1, 0
    %v470 = vsel %vm125, 1, 0
    %v471 = vsel %vm126, 1, 0
    %v472 = vsel %vm127, 1, 0
    %v473 = vsel %vm128, 1, 0
    %v474 = vsel %vm129, 1, 0
    %vm475 = vcmp.eq.s32.totalorder %v457, 1
    %vm476 = vcmp.eq.s32.totalorder %v458, 1
    %vm477 = vcmp.eq.s32.totalorder %v459, 1
    %vm478 = vcmp.eq.s32.totalorder %v460, 1
    %vm479 = vcmp.eq.s32.totalorder %v461, 1
    %vm480 = vcmp.eq.s32.totalorder %v462, 1
    %vm481 = vcmp.eq.s32.totalorder %v463, 1
    %vm482 = vcmp.eq.s32.totalorder %v464, 1
    %vm483 = vcmp.eq.s32.totalorder %v465, 1
    %vm484 = vcmp.eq.s32.totalorder %v466, 1
    %vm485 = vcmp.eq.s32.totalorder %v467, 1
    %vm486 = vcmp.eq.s32.totalorder %v468, 1
    %vm487 = vcmp.eq.s32.totalorder %v469, 1
    %vm488 = vcmp.eq.s32.totalorder %v470, 1
    %vm489 = vcmp.eq.s32.totalorder %v471, 1
    %vm490 = vcmp.eq.s32.totalorder %v472, 1
    %vm491 = vcmp.eq.s32.totalorder %v473, 1
    %vm492 = vcmp.eq.s32.totalorder %v474, 1
    %v493 = vsel %vm475, %v387, 0.0
    %v494 = vsel %vm476, %v390, 0.0
    %v495 = vsel %vm477, %v395, 0.0
    %v496 = vsel %vm478, %v398, 0.0
    %v497 = vsel %vm479, %v403, 0.0
    %v498 = vsel %vm480, %v406, 0.0
    %v499 = vsel %vm481, %v411, 0.0
    %v500 = vsel %vm482, %v414, 0.0
    %v501 = vsel %vm483, %v419, 0.0
    %v502 = vsel %vm484, %v422, 0.0
    %v503 = vsel %vm485, %v427, 0.0
    %v504 = vsel %vm486, %v430, 0.0
    %v505 = vsel %vm487, %v435, 0.0
    %v506 = vsel %vm488, %v438, 0.0
    %v507 = vsel %vm489, %v443, 0.0
    %v508 = vsel %vm490, %v446, 0.0
    %v509 = vsel %vm491, %v451, 0.0
    %v510 = vsel %vm492, %v454, 0.0
    %v511 = vadd.f32 %v493, %v494
    %v512 = vadd.f32 %v511, %v495
    %v513 = vadd.f32 %v512, %v496
    %v514 = vadd.f32 %v513, %v497
    %v515 = vadd.f32 %v514, %v498
    %v516 = vadd.f32 %v515, %v499
    %v517 = vadd.f32 %v516, %v500
    %v518 = vadd.f32 %v517, %v501
    %v519 = vadd.f32 %v518, %v502
    %v520 = vadd.f32 %v519, %v503
    %v521 = vadd.f32 %v520, %v504
    %v522 = vadd.f32 %v521, %v505
    %v523 = vadd.f32 %v522, %v506
    %v524 = vadd.f32 %v523, %v507
    %v525 = vadd.f32 %v524, %v508
    %v526 = vadd.f32 %v525, %v509
    %v527 = vadd.f32 %v526, %v510
    %v528 = vrot.slane %v527, 4
    %v529 = vadd.f32 %v527, %v528
    %v530 = vrot.slane %v529, 2
    %v531 = vadd.f32 %v529, %v530
    %v532 = vrot.slane %v531, 1
    %v533 = vadd.f32 %v531, %v532
    %v534 = vmul.f32 %v493, %v493
    %v535 = vmul.f32 %v494, %v494
    %v536 = vmul.f32 %v495, %v495
    %v537 = vmul.f32 %v496, %v496
    %v538 = vmul.f32 %v497, %v497
    %v539 = vmul.f32 %v498, %v498
    %v540 = vmul.f32 %v499, %v499
    %v541 = vmul.f32 %v500, %v500
    %v542 = vmul.f32 %v501, %v501
    %v543 = vmul.f32 %v502, %v502
    %v544 = vmul.f32 %v503, %v503
    %v545 = vmul.f32 %v504, %v504
    %v546 = vmul.f32 %v505, %v505
    %v547 = vmul.f32 %v506, %v506
    %v548 = vmul.f32 %v507, %v507
    %v549 = vmul.f32 %v508, %v508
    %v550 = vmul.f32 %v509, %v509
    %v551 = vmul.f32 %v510, %v510
    %v552 = vadd.f32 %v534, %v535
    %v553 = vadd.f32 %v552, %v536
    %v554 = vadd.f32 %v553, %v537
    %v555 = vadd.f32 %v554, %v538
    %v556 = vadd.f32 %v555, %v539
    %v557 = vadd.f32 %v556, %v540
    %v558 = vadd.f32 %v557, %v541
    %v559 = vadd.f32 %v558, %v542
    %v560 = vadd.f32 %v559, %v543
    %v561 = vadd.f32 %v560, %v544
    %v562 = vadd.f32 %v561, %v545
    %v563 = vadd.f32 %v562, %v546
    %v564 = vadd.f32 %v563, %v547
    %v565 = vadd.f32 %v564, %v548
    %v566 = vadd.f32 %v565, %v549
    %v567 = vadd.f32 %v566, %v550
    %v568 = vadd.f32 %v567, %v551
    %v569 = vrot.slane %v568, 4
    %v570 = vadd.f32 %v568, %v569
    %v571 = vrot.slane %v570, 2
    %v572 = vadd.f32 %v570, %v571
    %v573 = vrot.slane %v572, 1
    %v574 = vadd.f32 %v572, %v573
    %v575 = vmul.f32 %v533, 0.0069444445
    %v576 = vmul.f32 %v574, 0.0069444445
    %v577 = vmul.f32 %v575, %v575
    %v578 = vsub.f32 %v576, %v577
    %v579 = vmax.f32 %v578, 0.0
    %v580 = vld [vmem:[%s5] sm:$0x1]
    %v581 = vadd.f32 %v579, 1e-05
    %v582 = vrsqrt.pop %v581
    %v583 = vmul.f32 %v580, %v582
    %v584 = vld [vmem:[%s6] sm:$0x1]
    %v585 = vmul.f32 %v575, %v583
    %v586 = vsub.f32 %v584, %v585
    %v588 = vlaneseq
    %v589 = vshrl.u32 %v588, 7
    %v590 = vsub.s32 0, %v589
    %v591 = vrot.slane %v583, %v590
    %v593 = vmul.f32 %v387, %v591
    %v594 = vmul.f32 %v390, %v591
    %v595 = vmul.f32 %v395, %v591
    %v596 = vmul.f32 %v398, %v591
    %v597 = vmul.f32 %v403, %v591
    %v598 = vmul.f32 %v406, %v591
    %v599 = vmul.f32 %v411, %v591
    %v600 = vmul.f32 %v414, %v591
    %v601 = vmul.f32 %v419, %v591
    %v602 = vmul.f32 %v422, %v591
    %v603 = vmul.f32 %v427, %v591
    %v604 = vmul.f32 %v430, %v591
    %v605 = vmul.f32 %v435, %v591
    %v606 = vmul.f32 %v438, %v591
    %v607 = vmul.f32 %v443, %v591
    %v608 = vmul.f32 %v446, %v591
    %v609 = vmul.f32 %v451, %v591
    %v610 = vmul.f32 %v454, %v591
    %v612 = vlaneseq
    %v613 = vshrl.u32 %v612, 7
    %v614 = vsub.s32 0, %v613
    %v615 = vrot.slane %v586, %v614
    %v617 = vadd.f32 %v593, %v615
    %v618 = vadd.f32 %v594, %v615
    %v619 = vadd.f32 %v595, %v615
    %v620 = vadd.f32 %v596, %v615
    %v621 = vadd.f32 %v597, %v615
    %v622 = vadd.f32 %v598, %v615
    %v623 = vadd.f32 %v599, %v615
    %v624 = vadd.f32 %v600, %v615
    %v625 = vadd.f32 %v601, %v615
    %v626 = vadd.f32 %v602, %v615
    %v627 = vadd.f32 %v603, %v615
    %v628 = vadd.f32 %v604, %v615
    %v629 = vadd.f32 %v605, %v615
    %v630 = vadd.f32 %v606, %v615
    %v631 = vadd.f32 %v607, %v615
    %v632 = vadd.f32 %v608, %v615
    %v633 = vadd.f32 %v609, %v615
    %v634 = vadd.f32 %v610, %v615
    %v635 = vmax.f32 %v617, 0.0
    %v636 = vmax.f32 %v618, 0.0
    %v637 = vmax.f32 %v619, 0.0
    %v638 = vmax.f32 %v620, 0.0
    %v639 = vmax.f32 %v621, 0.0
    %v640 = vmax.f32 %v622, 0.0
    %v641 = vmax.f32 %v623, 0.0
    %v642 = vmax.f32 %v624, 0.0
    %v643 = vmax.f32 %v625, 0.0
    %v644 = vmax.f32 %v626, 0.0
    %v645 = vmax.f32 %v627, 0.0
    %v646 = vmax.f32 %v628, 0.0
    %v647 = vmax.f32 %v629, 0.0
    %v648 = vmax.f32 %v630, 0.0
    %v649 = vmax.f32 %v631, 0.0
    %v650 = vmax.f32 %v632, 0.0
    %v651 = vmax.f32 %v633, 0.0
    %v652 = vmax.f32 %v634, 0.0
    %v653 = vpack.c.bf16 %v636, %v635
    %v654 = vpack.c.bf16 %v638, %v637
    %v655 = vpack.c.bf16 %v640, %v639
    %v656 = vpack.c.bf16 %v642, %v641
    %v657 = vpack.c.bf16 %v644, %v643
    %v658 = vpack.c.bf16 %v646, %v645
    %v659 = vpack.c.bf16 %v648, %v647
    %v660 = vpack.c.bf16 %v650, %v649
    %v661 = vpack.c.bf16 %v652, %v651
    %v662 = vld [vmem:[#allocation7] sm:$0xf]
    %v663 = vld [vmem:[#allocation7 + $0x4] sm:$0xf]
    %v664 = vld [vmem:[#allocation7 + $0x8] sm:$0xf]
    %v665 = vld [vmem:[#allocation7 + $0xc] sm:$0xf]
    %v666 = vld [vmem:[#allocation7 + $0x10] sm:$0xf]
    %v667 = vld [vmem:[#allocation7 + $0x14] sm:$0xf]
    %v668 = vld [vmem:[#allocation7 + $0x18] sm:$0xf]
    %v669 = vld [vmem:[#allocation7 + $0x1c] sm:$0xf]
    %v670 = vld [vmem:[#allocation7 + $0x20] sm:$0xf]
    %v671 = vld [vmem:[#allocation7 + $0x24] sm:$0xf]
    %v672 = vld [vmem:[#allocation7 + $0x28] sm:$0xf]
    %v673 = vld [vmem:[#allocation7 + $0x2c] sm:$0xf]
    %v674 = vld [vmem:[#allocation7 + $0x30] sm:$0xf]
    %v675 = vld [vmem:[#allocation7 + $0x34] sm:$0xf]
    %v676 = vld [vmem:[#allocation7 + $0x38] sm:$0xf]
    %v677 = vld [vmem:[#allocation7 + $0x3c] sm:$0xf]
    %v678 = vld [vmem:[%s8] sm:$0x1]
    %v680 = vlaneseq
    %v681 = vshrl.u32 %v680, 7
    %v682 = vsub.s32 0, %v681
    %v683 = vrot.slane %v678, %v682
    %v701 = vunpack.c.l.b16 %v662
    %v702 = vunpack.c.l.b16 %v663
    %v703 = vunpack.c.l.b16 %v664
    %v704 = vunpack.c.l.b16 %v665
    %v705 = vunpack.c.l.b16 %v666
    %v706 = vunpack.c.l.b16 %v667
    %v707 = vunpack.c.l.b16 %v668
    %v708 = vunpack.c.l.b16 %v669
    %v709 = vunpack.c.l.b16 %v670
    %v710 = vunpack.c.l.b16 %v671
    %v711 = vunpack.c.l.b16 %v672
    %v712 = vunpack.c.l.b16 %v673
    %v713 = vunpack.c.l.b16 %v674
    %v714 = vunpack.c.l.b16 %v675
    %v715 = vunpack.c.l.b16 %v676
    %v716 = vunpack.c.l.b16 %v677
    %v717 = vpack.c.b16 %v702, %v701
    %v718 = vpack.c.b16 %v704, %v703
    %v719 = vpack.c.b16 %v706, %v705
    %v720 = vpack.c.b16 %v708, %v707
    %v721 = vpack.c.b16 %v710, %v709
    %v722 = vpack.c.b16 %v712, %v711
    %v723 = vpack.c.b16 %v714, %v713
    %v724 = vpack.c.b16 %v716, %v715
    %733 = vmatprep.subr.bf16.mxu0 0
    %734 = vmatpush1.bf16.msra.mxu0 %v717
    %735 = vmatprep.subr.bf16.mxu0 0
    %736 = vmatpush1.bf16.msra.mxu0 %v718
    %737 = vmatprep.subr.bf16.mxu0 0
    %738 = vmatpush1.bf16.msra.mxu0 %v719
    %739 = vmatprep.subr.bf16.mxu0 0
    %740 = vmatpush1.bf16.msra.mxu0 %v720
    %741 = vmatprep.subr.bf16.mxu0 0
    %742 = vmatpush1.bf16.msra.mxu0 %v721
    %743 = vmatprep.subr.bf16.mxu0 0
    %744 = vmatpush1.bf16.msra.mxu0 %v722
    %745 = vmatprep.subr.bf16.mxu0 0
    %746 = vmatpush1.bf16.msra.mxu0 %v723
    %747 = vmatprep.subr.bf16.mxu0 0
    %748 = vmatpush1.bf16.msra.mxu0 %v724
    %749 = vmatprep.subr.bf16.mxu0 0
    %750 = vmatpush1.bf16.msra.mxu0 0
    %751 = vmatprep.subr.bf16.mxu0 0
    %752 = vmatpush1.bf16.msra.mxu0 0
    %753 = vmatprep.subr.bf16.mxu0 0
    %754 = vmatpush1.bf16.msra.mxu0 0
    %755 = vmatprep.subr.bf16.mxu0 0
    %756 = vmatpush1.bf16.msra.mxu0 0
    %757 = vmatprep.subr.bf16.mxu0 0
    %758 = vmatpush1.bf16.msra.mxu0 0
    %759 = vmatprep.subr.bf16.mxu0 0
    %760 = vmatpush1.bf16.msra.mxu0 0
    %761 = vmatprep.subr.bf16.mxu0 0
    %762 = vmatpush1.bf16.msra.mxu0 0
    %763 = vmatprep.subr.bf16.mxu0 0
    %764 = vmatpush1.bf16.msra.mxu0 0
    %765 = vmatprep.mubr.bf16.mxu0 0
    %766 = vmatmul.mubr.bf16.gmra.mrb[0].mxu0 %v653
    %v767 = vpop.f32.mrb[0].mxu0
    %v768 = vadd.f32 %v683, %v767
    %v769 = vpop.f32.mrb[0].mxu0
    %v770 = vpop.f32.mrb[0].mxu0
    %v771 = vadd.f32 %v683, %v770
    %v772 = vpop.f32.mrb[0].mxu0
    %773 = vmatprep.mubr.bf16.mxu0 0
    %774 = vmatmul.mubr.bf16.gmra.mrb[0].mxu0 %v654
    %v775 = vpop.f32.mrb[0].mxu0
    %v776 = vadd.f32 %v683, %v775
    %v777 = vpop.f32.mrb[0].mxu0
    %v778 = vpop.f32.mrb[0].mxu0
    %v779 = vadd.f32 %v683, %v778
    %v780 = vpop.f32.mrb[0].mxu0
    %781 = vmatprep.mubr.bf16.mxu0 0
    %782 = vmatmul.mubr.bf16.gmra.mrb[0].mxu0 %v655
    %v783 = vpop.f32.mrb[0].mxu0
    %v784 = vadd.f32 %v683, %v783
    %v785 = vpop.f32.mrb[0].mxu0
    %v786 = vpop.f32.mrb[0].mxu0
    %v787 = vadd.f32 %v683, %v786
    %v788 = vpop.f32.mrb[0].mxu0
    %789 = vmatprep.mubr.bf16.mxu0 0
    %790 = vmatmul.mubr.bf16.gmra.mrb[0].mxu0 %v656
    %v791 = vpop.f32.mrb[0].mxu0
    %v792 = vadd.f32 %v683, %v791
    %v793 = vpop.f32.mrb[0].mxu0
    %v794 = vpop.f32.mrb[0].mxu0
    %v795 = vadd.f32 %v683, %v794
    %v796 = vpop.f32.mrb[0].mxu0
    %797 = vmatprep.mubr.bf16.mxu0 0
    %798 = vmatmul.mubr.bf16.gmra.mrb[0].mxu0 %v657
    %v799 = vpop.f32.mrb[0].mxu0
    %v800 = vadd.f32 %v683, %v799
    %v801 = vpop.f32.mrb[0].mxu0
    %v802 = vpop.f32.mrb[0].mxu0
    %v803 = vadd.f32 %v683, %v802
    %v804 = vpop.f32.mrb[0].mxu0
    %805 = vmatprep.mubr.bf16.mxu0 0
    %806 = vmatmul.mubr.bf16.gmra.mrb[0].mxu0 %v658
    %v807 = vpop.f32.mrb[0].mxu0
    %v808 = vadd.f32 %v683, %v807
    %v809 = vpop.f32.mrb[0].mxu0
    %v810 = vpop.f32.mrb[0].mxu0
    %v811 = vadd.f32 %v683, %v810
    %v812 = vpop.f32.mrb[0].mxu0
    %813 = vmatprep.mubr.bf16.mxu0 0
    %814 = vmatmul.mubr.bf16.gmra.mrb[0].mxu0 %v659
    %v815 = vpop.f32.mrb[0].mxu0
    %v816 = vadd.f32 %v683, %v815
    %v817 = vpop.f32.mrb[0].mxu0
    %v818 = vpop.f32.mrb[0].mxu0
    %v819 = vadd.f32 %v683, %v818
    %v820 = vpop.f32.mrb[0].mxu0
    %821 = vmatprep.mubr.bf16.mxu0 0
    %822 = vmatmul.mubr.bf16.gmra.mrb[0].mxu0 %v660
    %v823 = vpop.f32.mrb[0].mxu0
    %v824 = vadd.f32 %v683, %v823
    %v825 = vpop.f32.mrb[0].mxu0
    %v826 = vpop.f32.mrb[0].mxu0
    %v827 = vadd.f32 %v683, %v826
    %v828 = vpop.f32.mrb[0].mxu0
    %829 = vmatprep.mubr.bf16.mxu0 0
    %830 = vmatmul.mubr.bf16.gmra.mrb[0].mxu0 %v661
    %v831 = vpop.f32.mrb[0].mxu0
    %v832 = vadd.f32 %v683, %v831
    %v833 = vpop.f32.mrb[0].mxu0
    %v834 = vpop.f32.mrb[0].mxu0
    %v835 = vadd.f32 %v683, %v834
    %v836 = vpop.f32.mrb[0].mxu0
    %837 = vdwg.mxu0
    %v838 = vadd.f32 %v75, %v768
    %v839 = vadd.f32 %v76, %v771
    %v840 = vadd.f32 %v77, %v776
    %v841 = vadd.f32 %v78, %v779
    %v842 = vadd.f32 %v79, %v784
    %v843 = vadd.f32 %v80, %v787
    %v844 = vadd.f32 %v81, %v792
    %v845 = vadd.f32 %v82, %v795
    %v846 = vadd.f32 %v83, %v800
    %v847 = vadd.f32 %v84, %v803
    %v848 = vadd.f32 %v85, %v808
    %v849 = vadd.f32 %v86, %v811
    %v850 = vadd.f32 %v87, %v816
    %v851 = vadd.f32 %v88, %v819
    %v852 = vadd.f32 %v89, %v824
    %v853 = vadd.f32 %v90, %v827
    %v854 = vadd.f32 %v91, %v832
    %v855 = vadd.f32 %v92, %v835
    %856 = vst [vmem:[#allocation8] sm:$0xff] %v838
    %857 = vst [vmem:[#allocation8 + $0x8] sm:$0xff] %v839
    %858 = vst [vmem:[#allocation8 + $0x10] sm:$0xff] %v840
    %859 = vst [vmem:[#allocation8 + $0x18] sm:$0xff] %v841
    %860 = vst [vmem:[#allocation8 + $0x20] sm:$0xff] %v842
    %861 = vst [vmem:[#allocation8 + $0x28] sm:$0xff] %v843
    %862 = vst [vmem:[#allocation8 + $0x30] sm:$0xff] %v844
    %863 = vst [vmem:[#allocation8 + $0x38] sm:$0xff] %v845
    %864 = vst [vmem:[#allocation8 + $0x40] sm:$0xff] %v846
    %865 = vst [vmem:[#allocation8 + $0x48] sm:$0xff] %v847
    %866 = vst [vmem:[#allocation8 + $0x50] sm:$0xff] %v848
    %867 = vst [vmem:[#allocation8 + $0x58] sm:$0xff] %v849
    %868 = vst [vmem:[#allocation8 + $0x60] sm:$0xff] %v850
    %869 = vst [vmem:[#allocation8 + $0x68] sm:$0xff] %v851
    %870 = vst [vmem:[#allocation8 + $0x70] sm:$0xff] %v852
    %871 = vst [vmem:[#allocation8 + $0x78] sm:$0xff] %v853
    %872 = vst [vmem:[#allocation8 + $0x80] sm:$0xff] %v854
    %873 = vst [vmem:[#allocation8 + $0x88] sm:$0xff] %v855
    // Predicated region
    $region50: #{fc_res_block.1} parent=1 // pred_check
      _
    $region51: #{fc_res_block.1} parent=1 // pred_check_branch
      %875 = sbr.rel (0) target = $region53
    $region52: #{fc_res_block.1} parent=1 // pred_region
      %s877 = ssub.s32 2304, 2304
      %878 = vsyncadd [#allocation4], %s877
      %s879 = sshll.u32 [#allocation8], 4
      %s880 = int_to_ptr.vmem [resolvable:$true] %s879
      %885 = dma.vmem_to_hbm [thread:$0]  %s880, 2304, %s9, [#allocation4], 128, 128, 8
    $region53: #{fc_res_block.1} parent=1 // pred_fallthru
      _
    // Predicated region
    $region54: #{fc_res_block.1} parent=1 // pred_check
      _
    $region55: #{fc_res_block.1} parent=1 // pred_check_branch
      %887 = sbr.rel (0) target = $region57
    $region56: #{fc_res_block.1} parent=1 // pred_region
      %888 = dma.done [#allocation4], 2304
    $region57: #{fc_res_block.1} parent=1 // pred_fallthru
      _
    %889 = vsyncpa [#allocation3], 1
    %890 = vsyncpa [#allocation6], 1
    %891 = vsyncpa [#allocation4], 1

</llo_original>
